<compile_context>
chip_gen: v5e
topology: v5e:2x2
jax: 0.10.0
libtpu: 0.0.40
codegen_flags: <defaults>
</compile_context>

<pallas_src>
import functools

import jax
import jax.numpy as jnp
from jax import lax
from jax.experimental import pallas as pl
from jax.experimental.pallas import tpu as pltpu

_EPS = 1e-5


# ---------------------------------------------------------------------------
# lane-shift helpers (static shifts; slice + zero-fill, unambiguous semantics)
# ---------------------------------------------------------------------------
def _shift_left(a, s):
    # out[:, p] = a[:, p + s] for p < L - s, else 0.
    if s == 0:
        return a
    c, l = a.shape
    return jnp.concatenate([a[:, s:], jnp.zeros((c, s), a.dtype)], axis=1)


def _shift_right(a, s):
    # out[:, p] = a[:, p - s] for p >= s, else 0.
    if s == 0:
        return a
    c, l = a.shape
    return jnp.concatenate([jnp.zeros((c, s), a.dtype), a[:, : l - s]], axis=1)


def _im2col_taps(a, wp):
    # a: (C, Hp*Wp) zero-padded image, flat row-major (row stride = wp).
    # Returns (9*C, Hp*Wp); rows k*C + c hold channel c for tap k = dy*3 + dx.
    cols = []
    for dy in range(3):
        for dx in range(3):
            cols.append(_shift_left(a, dy * wp + dx))
    return jnp.concatenate(cols, axis=0)


# ---------------------------------------------------------------------------
# Fused SRNet_layer3 kernel (one image per grid step)
# ---------------------------------------------------------------------------
def _srnet_layer3_kernel(xp_ref, w1_ref, b1_ref, w2_ref, b2_ref, wr_ref, br_ref,
                         mask_ref, pool_ref, sub_ref, o_ref, *, wp):
    xp = xp_ref[0]                    # (Cin, Hp*Wp)  zero-padded, flat
    mask = mask_ref[...]              # (1, Hp*Wp)    1 on interior, 0 on pad ring

    # ---- layer1: 3x3 conv (+bias+BN folded) + swish, one im2col matmul ------
    z1 = jnp.dot(w1_ref[...], _im2col_taps(xp, wp),
                 preferred_element_type=jnp.float32) + b1_ref[...]
    y1 = z1 * jax.nn.sigmoid(z1)      # SwishMe: x * sigmoid(x)
    # re-embed y1 into the zero-padded flat frame (shift into interior + mask)
    y1p = _shift_right(y1, wp + 1) * mask

    # ---- conv2 (+bias+BN folded), one im2col matmul --------------------------
    y2 = jnp.dot(w2_ref[...], _im2col_taps(y1p, wp),
                 preferred_element_type=jnp.float32) + b2_ref[...]

    # ---- 3x3/stride-2 avg pool (pad=1, count_include_pad=True) as one matmul -
    pooled = jnp.dot(y2, pool_ref[...], preferred_element_type=jnp.float32)

    # ---- residual: stride-2 subsample (selection matmul) + 1x1 conv + BN -----
    xs = jnp.dot(xp, sub_ref[...], preferred_element_type=jnp.float32)  # (Cin, Ho*Wo)
    res = jnp.dot(wr_ref[...], xs, preferred_element_type=jnp.float32) + br_ref[...]

    o_ref[0] = pooled + res           # (Cout, Ho*Wo)


def _bn_fold(gamma, beta, mean, var):
    scale = gamma / jnp.sqrt(var + _EPS)
    shift = beta - mean * scale
    return scale, shift


def srnet_layer3_forward(x, p):
    """x: (N, Cin, H, W) float32 (NCHW, as in PyTorch); p: torch-layout params."""
    N, Cin, H, W = x.shape
    Cout = p["w1"].shape[0]
    Hp, Wp = H + 2, W + 2
    Ho, Wo = (H - 1) // 2 + 1, (W - 1) // 2 + 1
    L, Lo = Hp * Wp, Ho * Wo

    # --- fold eval-mode BN + conv bias into weights (host-side algebra) -------
    s1, h1 = _bn_fold(*p["bn1"])
    s2, h2 = _bn_fold(*p["bn2"])
    sr, hr = _bn_fold(*p["bnr"])
    # torch weight layout (O, I, kH, kW) -> im2col layout (O, 9*I), tap-major
    w1f = (p["w1"] * s1[:, None, None, None]).transpose(0, 2, 3, 1).reshape(Cout, 9 * Cin)
    w2f = (p["w2"] * s2[:, None, None, None]).transpose(0, 2, 3, 1).reshape(Cout, 9 * Cout)
    wrf = p["wr"].reshape(Cout, Cin) * sr[:, None]
    b1f = (p["b1"] * s1 + h1).reshape(Cout, 1)
    b2f = (p["b2"] * s2 + h2).reshape(Cout, 1)
    brf = (p["br"] * sr + hr).reshape(Cout, 1)

    # --- constants in flat padded coordinates (flat index = R*Wp + C) ---------
    rr = jnp.arange(Hp)[:, None]
    cc = jnp.arange(Wp)[None, :]
    maskf = ((rr >= 1) & (rr <= H) & (cc >= 1) & (cc <= W)).astype(jnp.float32)
    maskf = maskf.reshape(1, L)

    r4 = jnp.arange(Hp)[:, None, None, None]
    c4 = jnp.arange(Wp)[None, :, None, None]
    i4 = jnp.arange(Ho)[None, None, :, None]
    j4 = jnp.arange(Wo)[None, None, None, :]
    # conv outputs live at flat position r*Wp + c (r < H, c < W); other rows
    # of these matrices are zero so garbage positions contribute nothing.
    in_win = ((r4 < H) & (c4 < W) &
              (jnp.abs(r4 - 2 * i4) <= 1) & (jnp.abs(c4 - 2 * j4) <= 1))
    poolmat = jnp.where(in_win, 1.0 / 9.0, 0.0).reshape(L, Lo).astype(jnp.float32)
    # stride-2 subsample of the padded input: x[2i, 2j] = xpad[2i+1, 2j+1]
    submat = ((r4 == 2 * i4 + 1) & (c4 == 2 * j4 + 1)).astype(jnp.float32).reshape(L, Lo)

    # --- zero-pad the input once, flatten spatial dims (contiguous reshape) ---
    xpf = jnp.pad(x, ((0, 0), (0, 0), (1, 1), (1, 1))).reshape(N, Cin, L)

    kern = functools.partial(_srnet_layer3_kernel, wp=Wp)
    out_flat = pl.pallas_call(
        kern,
        out_shape=jax.ShapeDtypeStruct((N, Cout, Lo), jnp.float32),
        grid_spec=pltpu.PrefetchScalarGridSpec(
            num_scalar_prefetch=0,
            grid=(N,),
            in_specs=[
                pl.BlockSpec((1, Cin, L), lambda n: (n, 0, 0)),
                pl.BlockSpec((Cout, 9 * Cin), lambda n: (0, 0)),
                pl.BlockSpec((Cout, 1), lambda n: (0, 0)),
                pl.BlockSpec((Cout, 9 * Cout), lambda n: (0, 0)),
                pl.BlockSpec((Cout, 1), lambda n: (0, 0)),
                pl.BlockSpec((Cout, Cin), lambda n: (0, 0)),
                pl.BlockSpec((Cout, 1), lambda n: (0, 0)),
                pl.BlockSpec((1, L), lambda n: (0, 0)),
                pl.BlockSpec((L, Lo), lambda n: (0, 0)),
                pl.BlockSpec((L, Lo), lambda n: (0, 0)),
            ],
            out_specs=pl.BlockSpec((1, Cout, Lo), lambda n: (n, 0, 0)),
        ),
        compiler_params=pltpu.CompilerParams(
            dimension_semantics=("parallel",),
        ),
    )(xpf, w1f, b1f, w2f, b2f, wrf, brf, maskf, poolmat, submat)

    return out_flat.reshape(N, Cout, Ho, Wo)


# ---------------------------------------------------------------------------
# Pure-JAX reference (eval-mode semantics of the PyTorch module)
# ---------------------------------------------------------------------------
def reference_forward(x, p):
    dn = ("NCHW", "OIHW", "NCHW")
    hp = lax.Precision.HIGHEST

    def bn(y, gamma, beta, mean, var):
        return ((y - mean[None, :, None, None])
                / jnp.sqrt(var[None, :, None, None] + _EPS)
                * gamma[None, :, None, None] + beta[None, :, None, None])

    y = lax.conv_general_dilated(x, p["w1"], (1, 1), ((1, 1), (1, 1)),
                                 dimension_numbers=dn, precision=hp)
    y = y + p["b1"][None, :, None, None]
    y = bn(y, *p["bn1"])
    y = y * jax.nn.sigmoid(y)
    y = lax.conv_general_dilated(y, p["w2"], (1, 1), ((1, 1), (1, 1)),
                                 dimension_numbers=dn, precision=hp)
    y = y + p["b2"][None, :, None, None]
    y = bn(y, *p["bn2"])
    # nn.AvgPool2d(3, stride=2, padding=1), count_include_pad=True
    pooled = lax.reduce_window(y, 0.0, lax.add, (1, 1, 3, 3), (1, 1, 2, 2),
                               ((0, 0), (0, 0), (1, 1), (1, 1))) / 9.0
    res = lax.conv_general_dilated(x, p["wr"], (2, 2), ((0, 0), (0, 0)),
                                   dimension_numbers=dn, precision=hp)
    res = res + p["br"][None, :, None, None]
    res = bn(res, *p["bnr"])
    return res + pooled


if __name__ == "__main__":
    key = jax.random.PRNGKey(0)
    keys = jax.random.split(key, 10)
    N, Cin, Cout, H, W = 2, 4, 8, 16, 16

    def bn_params(k):
        k1, k2, k3, k4 = jax.random.split(k, 4)
        gamma = 1.0 + 0.1 * jax.random.normal(k1, (Cout,), jnp.float32)
        beta = 0.1 * jax.random.normal(k2, (Cout,), jnp.float32)
        mean = 0.1 * jax.random.normal(k3, (Cout,), jnp.float32)
        var = 1.0 + 0.5 * jax.random.uniform(k4, (Cout,), jnp.float32)
        return (gamma, beta, mean, var)

    params = {
        # PyTorch-native weight layouts: (O, I, kH, kW)
        "w1": 0.2 * jax.random.normal(keys[0], (Cout, Cin, 3, 3), jnp.float32),
        "b1": 0.1 * jax.random.normal(keys[1], (Cout,), jnp.float32),
        "bn1": bn_params(keys[2]),
        "w2": 0.2 * jax.random.normal(keys[3], (Cout, Cout, 3, 3), jnp.float32),
        "b2": 0.1 * jax.random.normal(keys[4], (Cout,), jnp.float32),
        "bn2": bn_params(keys[5]),
        "wr": 0.2 * jax.random.normal(keys[6], (Cout, Cin, 1, 1), jnp.float32),
        "br": 0.1 * jax.random.normal(keys[7], (Cout,), jnp.float32),
        "bnr": bn_params(keys[8]),
    }

    # PyTorch-style NCHW input, consumed directly (no layout transpose needed).
    x = jax.random.normal(keys[9], (N, Cin, H, W), jnp.float32)

    out = jax.block_until_ready(srnet_layer3_forward(x, params))
    ref = jax.block_until_ready(reference_forward(x, params))

    assert out.shape == (N, Cout, H // 2, W // 2), out.shape
    max_err = float(jnp.max(jnp.abs(out - ref)))
    assert max_err < 2e-3, f"max abs err {max_err}"
    print("KERNEL_OK")
</pallas_src>

<mosaic_0001>
module attributes {stable_mosaic.version = 11 : i64} {
  func.func @_srnet_layer3_kernel(%arg0: i32, %arg1: memref<1x4x324xf32, #tpu.memory_space<vmem>>, %arg2: memref<8x36xf32, #tpu.memory_space<vmem>>, %arg3: memref<8x1xf32, #tpu.memory_space<vmem>>, %arg4: memref<8x72xf32, #tpu.memory_space<vmem>>, %arg5: memref<8x1xf32, #tpu.memory_space<vmem>>, %arg6: memref<8x4xf32, #tpu.memory_space<vmem>>, %arg7: memref<8x1xf32, #tpu.memory_space<vmem>>, %arg8: memref<1x324xf32, #tpu.memory_space<vmem>>, %arg9: memref<324x64xf32, #tpu.memory_space<vmem>>, %arg10: memref<324x64xf32, #tpu.memory_space<vmem>>, %arg11: memref<1x8x64xf32, #tpu.memory_space<vmem>>) attributes {dimension_semantics = [#tpu.dimension_semantics<parallel>], iteration_bounds = array<i64: 2>, scalar_prefetch = 0 : i64, scratch_operands = 0 : i64, tpu.core_type = #tpu.core_type<tc>, window_params = [{transform_indices = @transform_0, window_bounds = array<i64: 1, 4, 324>}, {pipeline_mode = #tpu.pipeline_mode<synchronous>, transform_indices = @transform_1, window_bounds = array<i64: 8, 36>}, {pipeline_mode = #tpu.pipeline_mode<synchronous>, transform_indices = @transform_2, window_bounds = array<i64: 8, 1>}, {pipeline_mode = #tpu.pipeline_mode<synchronous>, transform_indices = @transform_3, window_bounds = array<i64: 8, 72>}, {pipeline_mode = #tpu.pipeline_mode<synchronous>, transform_indices = @transform_4, window_bounds = array<i64: 8, 1>}, {pipeline_mode = #tpu.pipeline_mode<synchronous>, transform_indices = @transform_5, window_bounds = array<i64: 8, 4>}, {pipeline_mode = #tpu.pipeline_mode<synchronous>, transform_indices = @transform_6, window_bounds = array<i64: 8, 1>}, {pipeline_mode = #tpu.pipeline_mode<synchronous>, transform_indices = @transform_7, window_bounds = array<i64: 1, 324>}, {pipeline_mode = #tpu.pipeline_mode<synchronous>, transform_indices = @transform_8, window_bounds = array<i64: 324, 64>}, {pipeline_mode = #tpu.pipeline_mode<synchronous>, transform_indices = @transform_9, window_bounds = array<i64: 324, 64>}, {transform_indices = @transform_10, window_bounds = array<i64: 1, 8, 64>}]} {
    %c0 = arith.constant 0 : index
    %c0_0 = arith.constant 0 : index
    %c0_1 = arith.constant 0 : index
    %0 = vector.load %arg1[%c0, %c0_0, %c0_1] : memref<1x4x324xf32, #tpu.memory_space<vmem>>, vector<1x4x324xf32>
    %1 = vector.shape_cast %0 : vector<1x4x324xf32> to vector<4x324xf32>
    %c0_2 = arith.constant 0 : index
    %c0_3 = arith.constant 0 : index
    %2 = vector.load %arg8[%c0_2, %c0_3] : memref<1x324xf32, #tpu.memory_space<vmem>>, vector<1x324xf32>
    %c0_4 = arith.constant 0 : index
    %c0_5 = arith.constant 0 : index
    %3 = vector.load %arg2[%c0_4, %c0_5] : memref<8x36xf32, #tpu.memory_space<vmem>>, vector<8x36xf32>
    %4 = vector.extract_strided_slice %1 {offsets = [0, 1], sizes = [4, 323], strides = [1, 1]} : vector<4x324xf32> to vector<4x323xf32>
    %cst = arith.constant 0.000000e+00 : f32
    %5 = vector.broadcast %cst : f32 to vector<4x1xf32>
    %6 = tpu.concatenate %4, %5 in 1 : vector<4x323xf32>, vector<4x1xf32> -> vector<4x324xf32>
    %7 = vector.extract_strided_slice %1 {offsets = [0, 2], sizes = [4, 322], strides = [1, 1]} : vector<4x324xf32> to vector<4x322xf32>
    %cst_6 = arith.constant 0.000000e+00 : f32
    %8 = vector.broadcast %cst_6 : f32 to vector<4x2xf32>
    %9 = tpu.concatenate %7, %8 in 1 : vector<4x322xf32>, vector<4x2xf32> -> vector<4x324xf32>
    %10 = vector.extract_strided_slice %1 {offsets = [0, 18], sizes = [4, 306], strides = [1, 1]} : vector<4x324xf32> to vector<4x306xf32>
    %cst_7 = arith.constant 0.000000e+00 : f32
    %11 = vector.broadcast %cst_7 : f32 to vector<4x18xf32>
    %12 = tpu.concatenate %10, %11 in 1 : vector<4x306xf32>, vector<4x18xf32> -> vector<4x324xf32>
    %13 = vector.extract_strided_slice %1 {offsets = [0, 19], sizes = [4, 305], strides = [1, 1]} : vector<4x324xf32> to vector<4x305xf32>
    %cst_8 = arith.constant 0.000000e+00 : f32
    %14 = vector.broadcast %cst_8 : f32 to vector<4x19xf32>
    %15 = tpu.concatenate %13, %14 in 1 : vector<4x305xf32>, vector<4x19xf32> -> vector<4x324xf32>
    %16 = vector.extract_strided_slice %1 {offsets = [0, 20], sizes = [4, 304], strides = [1, 1]} : vector<4x324xf32> to vector<4x304xf32>
    %cst_9 = arith.constant 0.000000e+00 : f32
    %17 = vector.broadcast %cst_9 : f32 to vector<4x20xf32>
    %18 = tpu.concatenate %16, %17 in 1 : vector<4x304xf32>, vector<4x20xf32> -> vector<4x324xf32>
    %19 = vector.extract_strided_slice %1 {offsets = [0, 36], sizes = [4, 288], strides = [1, 1]} : vector<4x324xf32> to vector<4x288xf32>
    %cst_10 = arith.constant 0.000000e+00 : f32
    %20 = vector.broadcast %cst_10 : f32 to vector<4x36xf32>
    %21 = tpu.concatenate %19, %20 in 1 : vector<4x288xf32>, vector<4x36xf32> -> vector<4x324xf32>
    %22 = vector.extract_strided_slice %1 {offsets = [0, 37], sizes = [4, 287], strides = [1, 1]} : vector<4x324xf32> to vector<4x287xf32>
    %cst_11 = arith.constant 0.000000e+00 : f32
    %23 = vector.broadcast %cst_11 : f32 to vector<4x37xf32>
    %24 = tpu.concatenate %22, %23 in 1 : vector<4x287xf32>, vector<4x37xf32> -> vector<4x324xf32>
    %25 = vector.extract_strided_slice %1 {offsets = [0, 38], sizes = [4, 286], strides = [1, 1]} : vector<4x324xf32> to vector<4x286xf32>
    %cst_12 = arith.constant 0.000000e+00 : f32
    %26 = vector.broadcast %cst_12 : f32 to vector<4x38xf32>
    %27 = tpu.concatenate %25, %26 in 1 : vector<4x286xf32>, vector<4x38xf32> -> vector<4x324xf32>
    %28 = tpu.concatenate %1, %6, %9, %12, %15, %18, %21, %24, %27 in 0 : vector<4x324xf32>, vector<4x324xf32>, vector<4x324xf32>, vector<4x324xf32>, vector<4x324xf32>, vector<4x324xf32>, vector<4x324xf32>, vector<4x324xf32>, vector<4x324xf32> -> vector<36x324xf32>
    %cst_13 = arith.constant dense<0.000000e+00> : vector<8x324xf32>
    %29 = tpu.matmul %3, %28, %cst_13 {dimension_numbers = #tpu.dot_dimension_numbers<[1], [0], [0], [1], [0, 0, 1, 1], [], []>} : vector<8x36xf32>, vector<36x324xf32>, vector<8x324xf32> -> vector<8x324xf32>
    %c0_14 = arith.constant 0 : index
    %c0_15 = arith.constant 0 : index
    %30 = vector.load %arg3[%c0_14, %c0_15] : memref<8x1xf32, #tpu.memory_space<vmem>>, vector<8x1xf32>
    %31 = vector.broadcast %30 : vector<8x1xf32> to vector<8x324xf32>
    %32 = arith.addf %29, %31 : vector<8x324xf32>
    %33 = arith.negf %32 : vector<8x324xf32>
    %34 = math.exp %33 : vector<8x324xf32>
    %cst_16 = arith.constant 1.000000e+00 : f32
    %35 = vector.broadcast %cst_16 : f32 to vector<8x324xf32>
    %36 = arith.addf %35, %34 : vector<8x324xf32>
    %37 = arith.divf %35, %36 : vector<8x324xf32>
    %38 = arith.mulf %32, %37 : vector<8x324xf32>
    %cst_17 = arith.constant 0.000000e+00 : f32
    %39 = vector.broadcast %cst_17 : f32 to vector<8x19xf32>
    %40 = vector.extract_strided_slice %38 {offsets = [0, 0], sizes = [8, 305], strides = [1, 1]} : vector<8x324xf32> to vector<8x305xf32>
    %41 = tpu.concatenate %39, %40 in 1 : vector<8x19xf32>, vector<8x305xf32> -> vector<8x324xf32>
    %42 = vector.broadcast %2 : vector<1x324xf32> to vector<8x324xf32>
    %43 = arith.mulf %41, %42 : vector<8x324xf32>
    %c0_18 = arith.constant 0 : index
    %c0_19 = arith.constant 0 : index
    %44 = vector.load %arg4[%c0_18, %c0_19] : memref<8x72xf32, #tpu.memory_space<vmem>>, vector<8x72xf32>
    %45 = vector.extract_strided_slice %43 {offsets = [0, 1], sizes = [8, 323], strides = [1, 1]} : vector<8x324xf32> to vector<8x323xf32>
    %cst_20 = arith.constant 0.000000e+00 : f32
    %46 = vector.broadcast %cst_20 : f32 to vector<8x1xf32>
    %47 = tpu.concatenate %45, %46 in 1 : vector<8x323xf32>, vector<8x1xf32> -> vector<8x324xf32>
    %48 = vector.extract_strided_slice %43 {offsets = [0, 2], sizes = [8, 322], strides = [1, 1]} : vector<8x324xf32> to vector<8x322xf32>
    %cst_21 = arith.constant 0.000000e+00 : f32
    %49 = vector.broadcast %cst_21 : f32 to vector<8x2xf32>
    %50 = tpu.concatenate %48, %49 in 1 : vector<8x322xf32>, vector<8x2xf32> -> vector<8x324xf32>
    %51 = vector.extract_strided_slice %43 {offsets = [0, 18], sizes = [8, 306], strides = [1, 1]} : vector<8x324xf32> to vector<8x306xf32>
    %cst_22 = arith.constant 0.000000e+00 : f32
    %52 = vector.broadcast %cst_22 : f32 to vector<8x18xf32>
    %53 = tpu.concatenate %51, %52 in 1 : vector<8x306xf32>, vector<8x18xf32> -> vector<8x324xf32>
    %54 = vector.extract_strided_slice %43 {offsets = [0, 19], sizes = [8, 305], strides = [1, 1]} : vector<8x324xf32> to vector<8x305xf32>
    %cst_23 = arith.constant 0.000000e+00 : f32
    %55 = vector.broadcast %cst_23 : f32 to vector<8x19xf32>
    %56 = tpu.concatenate %54, %55 in 1 : vector<8x305xf32>, vector<8x19xf32> -> vector<8x324xf32>
    %57 = vector.extract_strided_slice %43 {offsets = [0, 20], sizes = [8, 304], strides = [1, 1]} : vector<8x324xf32> to vector<8x304xf32>
    %cst_24 = arith.constant 0.000000e+00 : f32
    %58 = vector.broadcast %cst_24 : f32 to vector<8x20xf32>
    %59 = tpu.concatenate %57, %58 in 1 : vector<8x304xf32>, vector<8x20xf32> -> vector<8x324xf32>
    %60 = vector.extract_strided_slice %43 {offsets = [0, 36], sizes = [8, 288], strides = [1, 1]} : vector<8x324xf32> to vector<8x288xf32>
    %cst_25 = arith.constant 0.000000e+00 : f32
    %61 = vector.broadcast %cst_25 : f32 to vector<8x36xf32>
    %62 = tpu.concatenate %60, %61 in 1 : vector<8x288xf32>, vector<8x36xf32> -> vector<8x324xf32>
    %63 = vector.extract_strided_slice %43 {offsets = [0, 37], sizes = [8, 287], strides = [1, 1]} : vector<8x324xf32> to vector<8x287xf32>
    %cst_26 = arith.constant 0.000000e+00 : f32
    %64 = vector.broadcast %cst_26 : f32 to vector<8x37xf32>
    %65 = tpu.concatenate %63, %64 in 1 : vector<8x287xf32>, vector<8x37xf32> -> vector<8x324xf32>
    %66 = vector.extract_strided_slice %43 {offsets = [0, 38], sizes = [8, 286], strides = [1, 1]} : vector<8x324xf32> to vector<8x286xf32>
    %cst_27 = arith.constant 0.000000e+00 : f32
    %67 = vector.broadcast %cst_27 : f32 to vector<8x38xf32>
    %68 = tpu.concatenate %66, %67 in 1 : vector<8x286xf32>, vector<8x38xf32> -> vector<8x324xf32>
    %69 = tpu.concatenate %43, %47, %50, %53, %56, %59, %62, %65, %68 in 0 : vector<8x324xf32>, vector<8x324xf32>, vector<8x324xf32>, vector<8x324xf32>, vector<8x324xf32>, vector<8x324xf32>, vector<8x324xf32>, vector<8x324xf32>, vector<8x324xf32> -> vector<72x324xf32>
    %cst_28 = arith.constant dense<0.000000e+00> : vector<8x324xf32>
    %70 = tpu.matmul %44, %69, %cst_28 {dimension_numbers = #tpu.dot_dimension_numbers<[1], [0], [0], [1], [0, 0, 1, 1], [], []>} : vector<8x72xf32>, vector<72x324xf32>, vector<8x324xf32> -> vector<8x324xf32>
    %c0_29 = arith.constant 0 : index
    %c0_30 = arith.constant 0 : index
    %71 = vector.load %arg5[%c0_29, %c0_30] : memref<8x1xf32, #tpu.memory_space<vmem>>, vector<8x1xf32>
    %72 = vector.broadcast %71 : vector<8x1xf32> to vector<8x324xf32>
    %73 = arith.addf %70, %72 : vector<8x324xf32>
    %c0_31 = arith.constant 0 : index
    %c0_32 = arith.constant 0 : index
    %74 = vector.load %arg9[%c0_31, %c0_32] : memref<324x64xf32, #tpu.memory_space<vmem>>, vector<324x64xf32>
    %cst_33 = arith.constant dense<0.000000e+00> : vector<8x64xf32>
    %75 = tpu.matmul %73, %74, %cst_33 {dimension_numbers = #tpu.dot_dimension_numbers<[1], [0], [0], [1], [0, 0, 1, 1], [], []>} : vector<8x324xf32>, vector<324x64xf32>, vector<8x64xf32> -> vector<8x64xf32>
    %c0_34 = arith.constant 0 : index
    %c0_35 = arith.constant 0 : index
    %76 = vector.load %arg10[%c0_34, %c0_35] : memref<324x64xf32, #tpu.memory_space<vmem>>, vector<324x64xf32>
    %cst_36 = arith.constant dense<0.000000e+00> : vector<4x64xf32>
    %77 = tpu.matmul %1, %76, %cst_36 {dimension_numbers = #tpu.dot_dimension_numbers<[1], [0], [0], [1], [0, 0, 1, 1], [], []>} : vector<4x324xf32>, vector<324x64xf32>, vector<4x64xf32> -> vector<4x64xf32>
    %c0_37 = arith.constant 0 : index
    %c0_38 = arith.constant 0 : index
    %78 = vector.load %arg6[%c0_37, %c0_38] : memref<8x4xf32, #tpu.memory_space<vmem>>, vector<8x4xf32>
    %cst_39 = arith.constant dense<0.000000e+00> : vector<8x64xf32>
    %79 = tpu.matmul %78, %77, %cst_39 {dimension_numbers = #tpu.dot_dimension_numbers<[1], [0], [0], [1], [0, 0, 1, 1], [], []>} : vector<8x4xf32>, vector<4x64xf32>, vector<8x64xf32> -> vector<8x64xf32>
    %c0_40 = arith.constant 0 : index
    %c0_41 = arith.constant 0 : index
    %80 = vector.load %arg7[%c0_40, %c0_41] : memref<8x1xf32, #tpu.memory_space<vmem>>, vector<8x1xf32>
    %81 = vector.broadcast %80 : vector<8x1xf32> to vector<8x64xf32>
    %82 = arith.addf %79, %81 : vector<8x64xf32>
    %83 = arith.addf %75, %82 : vector<8x64xf32>
    %c0_42 = arith.constant 0 : index
    %c0_43 = arith.constant 0 : index
    %c0_44 = arith.constant 0 : index
    %84 = vector.load %arg11[%c0_42, %c0_43, %c0_44] : memref<1x8x64xf32, #tpu.memory_space<vmem>>, vector<1x8x64xf32>
    %85 = vector.shape_cast %84 : vector<1x8x64xf32> to vector<8x64xf32>
    %86 = vector.shape_cast %83 : vector<8x64xf32> to vector<1x8x64xf32>
    tpu.vector_store %arg11[%c0_42, %c0_43, %c0_44], %86 {strides = array<i32>} : memref<1x8x64xf32, #tpu.memory_space<vmem>>, vector<1x8x64xf32>,
    return
  }
  func.func @transform_0(%arg0: i32) -> (i32, i32, i32) {
    %c0_i32 = arith.constant 0 : i32
    %c0_i32_0 = arith.constant 0 : i32
    %c0_i32_1 = arith.constant 0 : i32
    return %arg0, %c0_i32, %c0_i32_0 : i32, i32, i32
  }
  func.func @transform_1(%arg0: i32) -> (i32, i32) {
    %c0_i32 = arith.constant 0 : i32
    %c0_i32_0 = arith.constant 0 : i32
    %c0_i32_1 = arith.constant 0 : i32
    return %c0_i32, %c0_i32_0 : i32, i32
  }
  func.func @transform_2(%arg0: i32) -> (i32, i32) {
    %c0_i32 = arith.constant 0 : i32
    %c0_i32_0 = arith.constant 0 : i32
    %c0_i32_1 = arith.constant 0 : i32
    return %c0_i32, %c0_i32_0 : i32, i32
  }
  func.func @transform_3(%arg0: i32) -> (i32, i32) {
    %c0_i32 = arith.constant 0 : i32
    %c0_i32_0 = arith.constant 0 : i32
    %c0_i32_1 = arith.constant 0 : i32
    return %c0_i32, %c0_i32_0 : i32, i32
  }
  func.func @transform_4(%arg0: i32) -> (i32, i32) {
    %c0_i32 = arith.constant 0 : i32
    %c0_i32_0 = arith.constant 0 : i32
    %c0_i32_1 = arith.constant 0 : i32
    return %c0_i32, %c0_i32_0 : i32, i32
  }
  func.func @transform_5(%arg0: i32) -> (i32, i32) {
    %c0_i32 = arith.constant 0 : i32
    %c0_i32_0 = arith.constant 0 : i32
    %c0_i32_1 = arith.constant 0 : i32
    return %c0_i32, %c0_i32_0 : i32, i32
  }
  func.func @transform_6(%arg0: i32) -> (i32, i32) {
    %c0_i32 = arith.constant 0 : i32
    %c0_i32_0 = arith.constant 0 : i32
    %c0_i32_1 = arith.constant 0 : i32
    return %c0_i32, %c0_i32_0 : i32, i32
  }
  func.func @transform_7(%arg0: i32) -> (i32, i32) {
    %c0_i32 = arith.constant 0 : i32
    %c0_i32_0 = arith.constant 0 : i32
    %c0_i32_1 = arith.constant 0 : i32
    return %c0_i32, %c0_i32_0 : i32, i32
  }
  func.func @transform_8(%arg0: i32) -> (i32, i32) {
    %c0_i32 = arith.constant 0 : i32
    %c0_i32_0 = arith.constant 0 : i32
    %c0_i32_1 = arith.constant 0 : i32
    return %c0_i32, %c0_i32_0 : i32, i32
  }
  func.func @transform_9(%arg0: i32) -> (i32, i32) {
    %c0_i32 = arith.constant 0 : i32
    %c0_i32_0 = arith.constant 0 : i32
    %c0_i32_1 = arith.constant 0 : i32
    return %c0_i32, %c0_i32_0 : i32, i32
  }
  func.func @transform_10(%arg0: i32) -> (i32, i32, i32) {
    %c0_i32 = arith.constant 0 : i32
    %c0_i32_0 = arith.constant 0 : i32
    %c0_i32_1 = arith.constant 0 : i32
    return %arg0, %c0_i32, %c0_i32_0 : i32, i32, i32
  }
}

</mosaic_0001>

<llo_original>
// kernel: tpu_custom_call.1
$region0: #{tpu_custom_call.1}
  #allocation0 [shape = 'u32[]', space=smem, size = 0x4, offset = 0x4, fixed_abs, tag = 'smem constant byte address 0x4 - core index']
  #allocation1 [shape = 'u32[72,128]{1,0:T(1,128)}', space=vmem, size = 0x9000, scoped, tag = 'internal scratch']
  %s0 = inlined_call_operand.vmem [shape: f32[2,4,324], index: 0, kind: input, shape index: {}]
  %s1 = inlined_call_operand.vmem [shape: f32[8,36], index: 1, kind: input, shape index: {}]
  %s2 = inlined_call_operand.vmem [shape: f32[8,1], index: 2, kind: input, shape index: {}]
  %s3 = inlined_call_operand.vmem [shape: f32[8,72], index: 3, kind: input, shape index: {}]
  %s4 = inlined_call_operand.vmem [shape: f32[8,1], index: 4, kind: input, shape index: {}]
  %s5 = inlined_call_operand.vmem [shape: f32[8,4], index: 5, kind: input, shape index: {}]
  %s6 = inlined_call_operand.vmem [shape: f32[8,1], index: 6, kind: input, shape index: {}]
  %s7 = inlined_call_operand.vmem [shape: f32[1,324], index: 7, kind: input, shape index: {}]
  %s8 = inlined_call_operand.vmem [shape: f32[324,64], index: 8, kind: input, shape index: {}]
  %s9 = inlined_call_operand.vmem [shape: f32[324,64], index: 9, kind: input, shape index: {}]
  %s10 = inlined_call_operand.hbm [shape: f32[2,8,64], index: 10, kind: output, shape index: {}]
  %s11 = sld [smem:[#allocation0]]
  $region73: #{tpu_custom_call.1} parent=0
    _
  %s13 = ssub.s32 1, %s11
  %s14 = scalar_select 0, %s13, %s11
  $region1: #{tpu_custom_call.1} parent=0
    #allocation2 [shape = 'u8[8192]{0}', space=vmem, size = 0x2000, scoped, tag = 'output window, operand 0']
    #allocation3 [shape = 's32[2]{0}', space=sflag, size = 0x8, scoped, tag = 'scoped memory for tpu_custom_call.1']
    %15 = vsyncpa [#allocation3], 0
    %s16 = scalar_lea.sflag [#allocation3], 1
    %17 = vsyncpa %s16, 0
    loop: start=0, step=1, limit=4
    $region2: #{tpu_custom_call.1} parent=1 // loop_pre_header
      _
    $region3: #{tpu_custom_call.1} parent=1 // loop_header
      %s19 = sphi 0, %s23
      %p20 = scmp.ge.s32.totalorder %s19, 4
      %s29 = sphi 0, %s31
      %s32 = sphi 0, %s29
      %s33 = sphi 0, %s32
      %s49 = sphi 0, %s33
      %s53 = sphi 0, %s53
      %s55 = sphi 0, %s53
      %s56 = sphi 0, %s55
      %s70 = sphi 0, %s56
      %s74 = sphi 0, %s74
      %s76 = sphi 0, %s74
      %s77 = sphi 0, %s76
      %s91 = sphi 0, %s77
      %s95 = sphi 0, %s95
      %s97 = sphi 0, %s95
      %s98 = sphi 0, %s97
      %s112 = sphi 0, %s98
      %s116 = sphi 0, %s116
      %s118 = sphi 0, %s116
      %s119 = sphi 0, %s118
      %s133 = sphi 0, %s119
      %s137 = sphi 0, %s137
      %s139 = sphi 0, %s137
      %s140 = sphi 0, %s139
      %s154 = sphi 0, %s140
      %s158 = sphi 0, %s158
      %s160 = sphi 0, %s158
      %s161 = sphi 0, %s160
      %s175 = sphi 0, %s161
      %s179 = sphi 0, %s179
      %s181 = sphi 0, %s179
      %s182 = sphi 0, %s181
      %s196 = sphi 0, %s182
      %s200 = sphi 0, %s200
      %s202 = sphi 0, %s200
      %s203 = sphi 0, %s202
      %s217 = sphi 0, %s203
      %s221 = sphi 0, %s221
      %s223 = sphi 0, %s221
      %s224 = sphi 0, %s223
      %s238 = sphi 0, %s224
      %s244 = sphi 0, %s246
      %s247 = sphi 0, %s244
      %s248 = sphi 0, %s247
      %s264 = sphi 0, %s248
    $region4: #{tpu_custom_call.1} parent=1 // loop_header_branch
      %22 = sbr.rel (%p20) target = $region8
    $region5: #{tpu_custom_call.1} parent=1 // loop_body
      %s24 = ssub.s32 %s19, 1
      %s25 = ssub.s32 %s19, 2
      %s26 = sadd.s32 %s19, 1
      %s27 = ssub.s32 %s19, %s26
      %p28 = scmp.eq.s32.totalorder %s27, 0
      %s30 = sadd.s32 %s29, 1
      %s31 = scalar_select %p28, %s29, %s30
      %p34 = pneg %p28
      %p35 = scmp.eq.s32.totalorder %s19, 1
      %p36 = por %p34, %p35
      %p37 = scmp.ne.s32.totalorder %s29, %s32
      %p38 = scmp.eq.s32.totalorder %s19, 0
      %p39 = por %p37, %p38
      %p40 = scmp.ne.s32.totalorder %s29, %s32
      %p41 = scmp.eq.s32.totalorder %s24, 1
      %p42 = por %p40, %p41
      %p43 = scmp.ne.s32.totalorder %s32, %s33
      %p44 = scmp.eq.s32.totalorder %s24, 0
      %p45 = por %p43, %p44
      %p46 = scmp.ne.s32.totalorder %s32, %s33
      %p47 = scmp.eq.s32.totalorder %s25, 1
      %p48 = por %p46, %p47
      %p50 = scmp.ne.s32.totalorder %s33, %s49
      %p51 = scmp.eq.s32.totalorder %s25, 0
      %p52 = por %p50, %p51
      %s54 = sadd.s32 %s53, 1
      %p57 = scmp.eq.s32.totalorder %s19, 1
      %p58 = scmp.ne.s32.totalorder %s53, %s55
      %p59 = scmp.eq.s32.totalorder %s19, 0
      %p60 = por %p58, %p59
      %p61 = scmp.ne.s32.totalorder %s53, %s55
      %p62 = scmp.eq.s32.totalorder %s24, 1
      %p63 = por %p61, %p62
      %p64 = scmp.ne.s32.totalorder %s55, %s56
      %p65 = scmp.eq.s32.totalorder %s24, 0
      %p66 = por %p64, %p65
      %p67 = scmp.ne.s32.totalorder %s55, %s56
      %p68 = scmp.eq.s32.totalorder %s25, 1
      %p69 = por %p67, %p68
      %p71 = scmp.ne.s32.totalorder %s56, %s70
      %p72 = scmp.eq.s32.totalorder %s25, 0
      %p73 = por %p71, %p72
      %s75 = sadd.s32 %s74, 1
      %p78 = scmp.eq.s32.totalorder %s19, 1
      %p79 = scmp.ne.s32.totalorder %s74, %s76
      %p80 = scmp.eq.s32.totalorder %s19, 0
      %p81 = por %p79, %p80
      %p82 = scmp.ne.s32.totalorder %s74, %s76
      %p83 = scmp.eq.s32.totalorder %s24, 1
      %p84 = por %p82, %p83
      %p85 = scmp.ne.s32.totalorder %s76, %s77
      %p86 = scmp.eq.s32.totalorder %s24, 0
      %p87 = por %p85, %p86
      %p88 = scmp.ne.s32.totalorder %s76, %s77
      %p89 = scmp.eq.s32.totalorder %s25, 1
      %p90 = por %p88, %p89
      %p92 = scmp.ne.s32.totalorder %s77, %s91
      %p93 = scmp.eq.s32.totalorder %s25, 0
      %p94 = por %p92, %p93
      %s96 = sadd.s32 %s95, 1
      %p99 = scmp.eq.s32.totalorder %s19, 1
      %p100 = scmp.ne.s32.totalorder %s95, %s97
      %p101 = scmp.eq.s32.totalorder %s19, 0
      %p102 = por %p100, %p101
      %p103 = scmp.ne.s32.totalorder %s95, %s97
      %p104 = scmp.eq.s32.totalorder %s24, 1
      %p105 = por %p103, %p104
      %p106 = scmp.ne.s32.totalorder %s97, %s98
      %p107 = scmp.eq.s32.totalorder %s24, 0
      %p108 = por %p106, %p107
      %p109 = scmp.ne.s32.totalorder %s97, %s98
      %p110 = scmp.eq.s32.totalorder %s25, 1
      %p111 = por %p109, %p110
      %p113 = scmp.ne.s32.totalorder %s98, %s112
      %p114 = scmp.eq.s32.totalorder %s25, 0
      %p115 = por %p113, %p114
      %s117 = sadd.s32 %s116, 1
      %p120 = scmp.eq.s32.totalorder %s19, 1
      %p121 = scmp.ne.s32.totalorder %s116, %s118
      %p122 = scmp.eq.s32.totalorder %s19, 0
      %p123 = por %p121, %p122
      %p124 = scmp.ne.s32.totalorder %s116, %s118
      %p125 = scmp.eq.s32.totalorder %s24, 1
      %p126 = por %p124, %p125
      %p127 = scmp.ne.s32.totalorder %s118, %s119
      %p128 = scmp.eq.s32.totalorder %s24, 0
      %p129 = por %p127, %p128
      %p130 = scmp.ne.s32.totalorder %s118, %s119
      %p131 = scmp.eq.s32.totalorder %s25, 1
      %p132 = por %p130, %p131
      %p134 = scmp.ne.s32.totalorder %s119, %s133
      %p135 = scmp.eq.s32.totalorder %s25, 0
      %p136 = por %p134, %p135
      %s138 = sadd.s32 %s137, 1
      %p141 = scmp.eq.s32.totalorder %s19, 1
      %p142 = scmp.ne.s32.totalorder %s137, %s139
      %p143 = scmp.eq.s32.totalorder %s19, 0
      %p144 = por %p142, %p143
      %p145 = scmp.ne.s32.totalorder %s137, %s139
      %p146 = scmp.eq.s32.totalorder %s24, 1
      %p147 = por %p145, %p146
      %p148 = scmp.ne.s32.totalorder %s139, %s140
      %p149 = scmp.eq.s32.totalorder %s24, 0
      %p150 = por %p148, %p149
      %p151 = scmp.ne.s32.totalorder %s139, %s140
      %p152 = scmp.eq.s32.totalorder %s25, 1
      %p153 = por %p151, %p152
      %p155 = scmp.ne.s32.totalorder %s140, %s154
      %p156 = scmp.eq.s32.totalorder %s25, 0
      %p157 = por %p155, %p156
      %s159 = sadd.s32 %s158, 1
      %p162 = scmp.eq.s32.totalorder %s19, 1
      %p163 = scmp.ne.s32.totalorder %s158, %s160
      %p164 = scmp.eq.s32.totalorder %s19, 0
      %p165 = por %p163, %p164
      %p166 = scmp.ne.s32.totalorder %s158, %s160
      %p167 = scmp.eq.s32.totalorder %s24, 1
      %p168 = por %p166, %p167
      %p169 = scmp.ne.s32.totalorder %s160, %s161
      %p170 = scmp.eq.s32.totalorder %s24, 0
      %p171 = por %p169, %p170
      %p172 = scmp.ne.s32.totalorder %s160, %s161
      %p173 = scmp.eq.s32.totalorder %s25, 1
      %p174 = por %p172, %p173
      %p176 = scmp.ne.s32.totalorder %s161, %s175
      %p177 = scmp.eq.s32.totalorder %s25, 0
      %p178 = por %p176, %p177
      %s180 = sadd.s32 %s179, 1
      %p183 = scmp.eq.s32.totalorder %s19, 1
      %p184 = scmp.ne.s32.totalorder %s179, %s181
      %p185 = scmp.eq.s32.totalorder %s19, 0
      %p186 = por %p184, %p185
      %p187 = scmp.ne.s32.totalorder %s179, %s181
      %p188 = scmp.eq.s32.totalorder %s24, 1
      %p189 = por %p187, %p188
      %p190 = scmp.ne.s32.totalorder %s181, %s182
      %p191 = scmp.eq.s32.totalorder %s24, 0
      %p192 = por %p190, %p191
      %p193 = scmp.ne.s32.totalorder %s181, %s182
      %p194 = scmp.eq.s32.totalorder %s25, 1
      %p195 = por %p193, %p194
      %p197 = scmp.ne.s32.totalorder %s182, %s196
      %p198 = scmp.eq.s32.totalorder %s25, 0
      %p199 = por %p197, %p198
      %s201 = sadd.s32 %s200, 1
      %p204 = scmp.eq.s32.totalorder %s19, 1
      %p205 = scmp.ne.s32.totalorder %s200, %s202
      %p206 = scmp.eq.s32.totalorder %s19, 0
      %p207 = por %p205, %p206
      %p208 = scmp.ne.s32.totalorder %s200, %s202
      %p209 = scmp.eq.s32.totalorder %s24, 1
      %p210 = por %p208, %p209
      %p211 = scmp.ne.s32.totalorder %s202, %s203
      %p212 = scmp.eq.s32.totalorder %s24, 0
      %p213 = por %p211, %p212
      %p214 = scmp.ne.s32.totalorder %s202, %s203
      %p215 = scmp.eq.s32.totalorder %s25, 1
      %p216 = por %p214, %p215
      %p218 = scmp.ne.s32.totalorder %s203, %s217
      %p219 = scmp.eq.s32.totalorder %s25, 0
      %p220 = por %p218, %p219
      %s222 = sadd.s32 %s221, 1
      %p225 = scmp.eq.s32.totalorder %s19, 1
      %p226 = scmp.ne.s32.totalorder %s221, %s223
      %p227 = scmp.eq.s32.totalorder %s19, 0
      %p228 = por %p226, %p227
      %p229 = scmp.ne.s32.totalorder %s221, %s223
      %p230 = scmp.eq.s32.totalorder %s24, 1
      %p231 = por %p229, %p230
      %p232 = scmp.ne.s32.totalorder %s223, %s224
      %p233 = scmp.eq.s32.totalorder %s24, 0
      %p234 = por %p232, %p233
      %p235 = scmp.ne.s32.totalorder %s223, %s224
      %p236 = scmp.eq.s32.totalorder %s25, 1
      %p237 = por %p235, %p236
      %p239 = scmp.ne.s32.totalorder %s224, %s238
      %p240 = scmp.eq.s32.totalorder %s25, 0
      %p241 = por %p239, %p240
      %s242 = ssub.s32 %s19, %s26
      %p243 = scmp.eq.s32.totalorder %s242, 0
      %s245 = sadd.s32 %s244, 1
      %s246 = scalar_select %p243, %s244, %s245
      %p249 = pneg %p243
      %p250 = scmp.eq.s32.totalorder %s19, 1
      %p251 = por %p249, %p250
      %p252 = scmp.ne.s32.totalorder %s244, %s247
      %p253 = scmp.eq.s32.totalorder %s19, 0
      %p254 = por %p252, %p253
      %p255 = scmp.ne.s32.totalorder %s244, %s247
      %p256 = scmp.eq.s32.totalorder %s24, 1
      %p257 = por %p255, %p256
      %p258 = scmp.ne.s32.totalorder %s247, %s248
      %p259 = scmp.eq.s32.totalorder %s24, 0
      %p260 = por %p258, %p259
      %p261 = scmp.ne.s32.totalorder %s247, %s248
      %p262 = scmp.eq.s32.totalorder %s25, 1
      %p263 = por %p261, %p262
      %p265 = scmp.ne.s32.totalorder %s248, %s264
      %p266 = scmp.eq.s32.totalorder %s25, 0
      %p267 = por %p265, %p266
      %p268 = scmp.le.s32.totalorder 1, %s19
      %p269 = scmp.lt.s32.totalorder %s19, 3
      %p270 = pnand %p268, %p269
      %p271 = pneg %p270
      // Predicated region
      $region9: #{tpu_custom_call.1} parent=5 // pred_check
        _
      $region10: #{tpu_custom_call.1} parent=5 // pred_check_branch
        %273 = sbr.rel (%p270) target = $region12
      $region11: #{tpu_custom_call.1} parent=5 // pred_region
        %s274 = ssub.s32 %s19, 1
        // Predicated region
        $region13: #{tpu_custom_call.1} parent=11 // pred_check
          %p275 = pneg %p66
        $region14: #{tpu_custom_call.1} parent=11 // pred_check_branch
          %277 = sbr.rel (%p275) target = $region16
        $region15: #{tpu_custom_call.1} parent=11 // pred_region
          _
        $region16: #{tpu_custom_call.1} parent=11 // pred_fallthru
          _
        // Predicated region
        $region17: #{tpu_custom_call.1} parent=11 // pred_check
          %p278 = pneg %p87
        $region18: #{tpu_custom_call.1} parent=11 // pred_check_branch
          %280 = sbr.rel (%p278) target = $region20
        $region19: #{tpu_custom_call.1} parent=11 // pred_region
          _
        $region20: #{tpu_custom_call.1} parent=11 // pred_fallthru
          _
        // Predicated region
        $region21: #{tpu_custom_call.1} parent=11 // pred_check
          %p281 = pneg %p108
        $region22: #{tpu_custom_call.1} parent=11 // pred_check_branch
          %283 = sbr.rel (%p281) target = $region24
        $region23: #{tpu_custom_call.1} parent=11 // pred_region
          _
        $region24: #{tpu_custom_call.1} parent=11 // pred_fallthru
          _
        // Predicated region
        $region25: #{tpu_custom_call.1} parent=11 // pred_check
          %p284 = pneg %p129
        $region26: #{tpu_custom_call.1} parent=11 // pred_check_branch
          %286 = sbr.rel (%p284) target = $region28
        $region27: #{tpu_custom_call.1} parent=11 // pred_region
          _
        $region28: #{tpu_custom_call.1} parent=11 // pred_fallthru
          _
        // Predicated region
        $region29: #{tpu_custom_call.1} parent=11 // pred_check
          %p287 = pneg %p150
        $region30: #{tpu_custom_call.1} parent=11 // pred_check_branch
          %289 = sbr.rel (%p287) target = $region32
        $region31: #{tpu_custom_call.1} parent=11 // pred_region
          _
        $region32: #{tpu_custom_call.1} parent=11 // pred_fallthru
          _
        // Predicated region
        $region33: #{tpu_custom_call.1} parent=11 // pred_check
          %p290 = pneg %p171
        $region34: #{tpu_custom_call.1} parent=11 // pred_check_branch
          %292 = sbr.rel (%p290) target = $region36
        $region35: #{tpu_custom_call.1} parent=11 // pred_region
          _
        $region36: #{tpu_custom_call.1} parent=11 // pred_fallthru
          _
        // Predicated region
        $region37: #{tpu_custom_call.1} parent=11 // pred_check
          %p293 = pneg %p192
        $region38: #{tpu_custom_call.1} parent=11 // pred_check_branch
          %295 = sbr.rel (%p293) target = $region40
        $region39: #{tpu_custom_call.1} parent=11 // pred_region
          _
        $region40: #{tpu_custom_call.1} parent=11 // pred_fallthru
          _
        // Predicated region
        $region41: #{tpu_custom_call.1} parent=11 // pred_check
          %p296 = pneg %p213
        $region42: #{tpu_custom_call.1} parent=11 // pred_check_branch
          %298 = sbr.rel (%p296) target = $region44
        $region43: #{tpu_custom_call.1} parent=11 // pred_region
          _
        $region44: #{tpu_custom_call.1} parent=11 // pred_fallthru
          _
        // Predicated region
        $region45: #{tpu_custom_call.1} parent=11 // pred_check
          %p299 = pneg %p234
        $region46: #{tpu_custom_call.1} parent=11 // pred_check_branch
          %301 = sbr.rel (%p299) target = $region48
        $region47: #{tpu_custom_call.1} parent=11 // pred_region
          _
        $region48: #{tpu_custom_call.1} parent=11 // pred_fallthru
          _
      $region12: #{tpu_custom_call.1} parent=5 // pred_fallthru
        _
      %p302 = scmp.lt.s32.totalorder %s19, 2
      // Predicated region
      $region49: #{tpu_custom_call.1} parent=5 // pred_check
        %p303 = pneg %p302
      $region50: #{tpu_custom_call.1} parent=5 // pred_check_branch
        %305 = sbr.rel (%p303) target = $region52
      $region51: #{tpu_custom_call.1} parent=5 // pred_region
        // Predicated region
        $region53: #{tpu_custom_call.1} parent=51 // pred_check
          %p306 = pneg %p39
        $region54: #{tpu_custom_call.1} parent=51 // pred_check_branch
          %308 = sbr.rel (%p306) target = $region56
        $region55: #{tpu_custom_call.1} parent=51 // pred_region
          %p309 = scmp.lt.s32.totalorder %s19, 1
          %s310 = scalar_select %p309, %s19, 1
          %s311 = smul.addr %s310, 3
          %s312 = smul.addr %s311, 4
          %s313 = scalar_lea.vmem %s0, %s312
        $region56: #{tpu_custom_call.1} parent=51 // pred_fallthru
          _
      $region52: #{tpu_custom_call.1} parent=5 // pred_fallthru
        _
      %p314 = scmp.le.s32.totalorder 1, %s19
      %p315 = scmp.lt.s32.totalorder %s19, 3
      %p316 = pnand %p314, %p315
      %p317 = pneg %p316
      // Predicated region
      $region57: #{tpu_custom_call.1} parent=5 // pred_check
        _
      $region58: #{tpu_custom_call.1} parent=5 // pred_check_branch
        %319 = sbr.rel (%p316) target = $region60
      $region59: #{tpu_custom_call.1} parent=5 // pred_region
        %s320 = ssub.s32 %s19, 1
        %p321 = scmp.lt.s32.totalorder %s24, 1
        %s322 = scalar_select %p321, %s24, 1
        %s323 = smul.addr %s322, 3
        %s324 = smul.addr %s323, 4
        %s325 = scalar_lea.vmem %s0, %s324
        %p326 = pneg %p45
        %p327 = pneg %p42
        %p328 = pneg %p66
        %p329 = pneg %p63
        %p330 = pneg %p87
        %p331 = pneg %p84
        %p332 = pneg %p108
        %p333 = pneg %p105
        %p334 = pneg %p129
        %p335 = pneg %p126
        %p336 = pneg %p150
        %p337 = pneg %p147
        %p338 = pneg %p171
        %p339 = pneg %p168
        %p340 = pneg %p192
        %p341 = pneg %p189
        %p342 = pneg %p213
        %p343 = pneg %p210
        %p344 = pneg %p234
        %p345 = pneg %p231
        %p346 = pneg %p260
        %p347 = pneg %p257
        %s348 = sand.u32 %s247, 1
        %s349 = scalar_lea.sflag [#allocation3], %s348
        %s350 = sand.u32 %s247, 1
        %s351 = smul.addr %s350, 8
        %s352 = scalar_lea.vmem [#allocation2], %s351
        %p353 = scmp.lt.s32.totalorder %s24, 1
        %s354 = scalar_select %p353, %s24, 1
        %s355 = smul.addr %s354, 3
        %s356 = smul.addr %s355, 4
        %s357 = scalar_lea.vmem %s0, %s356
        %v358 = vld [vmem:[%s357] sm:$0xff]
        %v359 = vld [vmem:[%s357 + $0x8] sm:$0xf]
        %v360 = vld [vmem:[%s7] sm:$0x7]
        %v361 = vld [vmem:[%s1] sm:$0xff]
        %364 = vst [vmem:[#allocation1] ss:$2 sm:$0xff] %v358
        %s365 = scalar_lea.vmem [#allocation1], 16
        %366 = vst [vmem:[%s365] ss:$2 sm:$0xff] %v359
        %v367 = vld.sshfl [vmem:[#allocation1] sm:$0xff pattern:$0x75316420]
        %v368 = vld.sshfl [vmem:[#allocation1 + $0x8] sm:$0xff pattern:$0x75316420]
        %v369 = vld.sshfl [vmem:[#allocation1 + $0x10] sm:$0xff pattern:$0x75316420]
        %370 = vrot.lane.b32.xlu0 %v367, 127
        %v371 = vpop.permute.xlu0 %370
        %372 = vrot.lane.b32.xlu0 %v368, 127
        %v373 = vpop.permute.xlu0 %372
        %374 = vrot.lane.b32.xlu0 %v369, 127
        %v375 = vpop.permute.xlu0 %374
        %vm376 = vcmask 1039360
        %v377 = vsel %vm376, %v371, %v373
        %v378 = vsel %vm376, %v373, %v375
        %vm380 = vcmask 547840
        %v381 = vsel %vm380, %v375, 0.0
        %382 = vst [vmem:[#allocation1] ss:$2 sm:$0xff] %v358
        %s383 = scalar_lea.vmem [#allocation1], 16
        %384 = vst [vmem:[%s383] ss:$2 sm:$0xff] %v359
        %v385 = vld.sshfl [vmem:[#allocation1] sm:$0xff pattern:$0x75316420]
        %v386 = vld.sshfl [vmem:[#allocation1 + $0x8] sm:$0xff pattern:$0x75316420]
        %v387 = vld.sshfl [vmem:[#allocation1 + $0x10] sm:$0xff pattern:$0x75316420]
        %388 = vrot.lane.b32.xlu0 %v385, 126
        %v389 = vpop.permute.xlu0 %388
        %390 = vrot.lane.b32.xlu0 %v386, 126
        %v391 = vpop.permute.xlu0 %390
        %392 = vrot.lane.b32.xlu0 %v387, 126
        %v393 = vpop.permute.xlu0 %392
        %vm394 = vcmask 1031168
        %v395 = vsel %vm394, %v389, %v391
        %v396 = vsel %vm394, %v391, %v393
        %vm400 = vcmask 539648
        %v401 = vsel %vm400, %v393, 0.0
        %402 = vst [vmem:[#allocation1] ss:$2 sm:$0xff] %v358
        %s403 = scalar_lea.vmem [#allocation1], 16
        %404 = vst [vmem:[%s403] ss:$2 sm:$0xff] %v359
        %v405 = vld.sshfl [vmem:[#allocation1] sm:$0xff pattern:$0x75316420]
        %v406 = vld.sshfl [vmem:[#allocation1 + $0x8] sm:$0xff pattern:$0x75316420]
        %v407 = vld.sshfl [vmem:[#allocation1 + $0x10] sm:$0xff pattern:$0x75316420]
        %408 = vrot.lane.b32.xlu0 %v405, 110
        %v409 = vpop.permute.xlu0 %408
        %410 = vrot.lane.b32.xlu0 %v406, 110
        %v411 = vpop.permute.xlu0 %410
        %412 = vrot.lane.b32.xlu0 %v407, 110
        %v413 = vpop.permute.xlu0 %412
        %vm414 = vcmask 900096
        %v415 = vsel %vm414, %v409, %v411
        %v416 = vsel %vm414, %v411, %v413
        %vm418 = vcmask 408576
        %v419 = vsel %vm418, %v413, 0.0
        %420 = vst [vmem:[#allocation1] ss:$2 sm:$0xff] %v358
        %s421 = scalar_lea.vmem [#allocation1], 16
        %422 = vst [vmem:[%s421] ss:$2 sm:$0xff] %v359
        %v423 = vld.sshfl [vmem:[#allocation1] sm:$0xff pattern:$0x75316420]
        %v424 = vld.sshfl [vmem:[#allocation1 + $0x8] sm:$0xff pattern:$0x75316420]
        %v425 = vld.sshfl [vmem:[#allocation1 + $0x10] sm:$0xff pattern:$0x75316420]
        %426 = vrot.lane.b32.xlu0 %v423, 109
        %v427 = vpop.permute.xlu0 %426
        %428 = vrot.lane.b32.xlu0 %v424, 109
        %v429 = vpop.permute.xlu0 %428
        %430 = vrot.lane.b32.xlu0 %v425, 109
        %v431 = vpop.permute.xlu0 %430
        %vm432 = vcmask 891904
        %v433 = vsel %vm432, %v427, %v429
        %v434 = vsel %vm432, %v429, %v431
        %vm438 = vcmask 400384
        %v439 = vsel %vm438, %v431, 0.0
        %440 = vst [vmem:[#allocation1] ss:$2 sm:$0xff] %v358
        %s441 = scalar_lea.vmem [#allocation1], 16
        %442 = vst [vmem:[%s441] ss:$2 sm:$0xff] %v359
        %v443 = vld.sshfl [vmem:[#allocation1] sm:$0xff pattern:$0x75316420]
        %v444 = vld.sshfl [vmem:[#allocation1 + $0x8] sm:$0xff pattern:$0x75316420]
        %v445 = vld.sshfl [vmem:[#allocation1 + $0x10] sm:$0xff pattern:$0x75316420]
        %446 = vrot.lane.b32.xlu0 %v443, 108
        %v447 = vpop.permute.xlu0 %446
        %448 = vrot.lane.b32.xlu0 %v444, 108
        %v449 = vpop.permute.xlu0 %448
        %450 = vrot.lane.b32.xlu0 %v445, 108
        %v451 = vpop.permute.xlu0 %450
        %vm452 = vcmask 883712
        %v453 = vsel %vm452, %v447, %v449
        %v454 = vsel %vm452, %v449, %v451
        %vm456 = vcmask 392192
        %v457 = vsel %vm456, %v451, 0.0
        %458 = vst [vmem:[#allocation1] ss:$2 sm:$0xff] %v358
        %s459 = scalar_lea.vmem [#allocation1], 16
        %460 = vst [vmem:[%s459] ss:$2 sm:$0xff] %v359
        %v461 = vld.sshfl [vmem:[#allocation1] sm:$0xff pattern:$0x75316420]
        %v462 = vld.sshfl [vmem:[#allocation1 + $0x8] sm:$0xff pattern:$0x75316420]
        %v463 = vld.sshfl [vmem:[#allocation1 + $0x10] sm:$0xff pattern:$0x75316420]
        %464 = vrot.lane.b32.xlu0 %v461, 92
        %v465 = vpop.permute.xlu0 %464
        %466 = vrot.lane.b32.xlu0 %v462, 92
        %v467 = vpop.permute.xlu0 %466
        %468 = vrot.lane.b32.xlu0 %v463, 92
        %v469 = vpop.permute.xlu0 %468
        %vm470 = vcmask 752640
        %v471 = vsel %vm470, %v465, %v467
        %v472 = vsel %vm470, %v467, %v469
        %vm476 = vcmask 261120
        %v477 = vsel %vm476, %v469, 0.0
        %478 = vst [vmem:[#allocation1] ss:$2 sm:$0xff] %v358
        %s479 = scalar_lea.vmem [#allocation1], 16
        %480 = vst [vmem:[%s479] ss:$2 sm:$0xff] %v359
        %v481 = vld.sshfl [vmem:[#allocation1] sm:$0xff pattern:$0x75316420]
        %v482 = vld.sshfl [vmem:[#allocation1 + $0x8] sm:$0xff pattern:$0x75316420]
        %v483 = vld.sshfl [vmem:[#allocation1 + $0x10] sm:$0xff pattern:$0x75316420]
        %484 = vrot.lane.b32.xlu0 %v481, 91
        %v485 = vpop.permute.xlu0 %484
        %486 = vrot.lane.b32.xlu0 %v482, 91
        %v487 = vpop.permute.xlu0 %486
        %488 = vrot.lane.b32.xlu0 %v483, 91
        %v489 = vpop.permute.xlu0 %488
        %vm490 = vcmask 744448
        %v491 = vsel %vm490, %v485, %v487
        %v492 = vsel %vm490, %v487, %v489
        %vm494 = vcmask 252928
        %v495 = vsel %vm494, %v489, 0.0
        %496 = vst [vmem:[#allocation1] ss:$2 sm:$0xff] %v358
        %s497 = scalar_lea.vmem [#allocation1], 16
        %498 = vst [vmem:[%s497] ss:$2 sm:$0xff] %v359
        %v499 = vld.sshfl [vmem:[#allocation1] sm:$0xff pattern:$0x75316420]
        %v500 = vld.sshfl [vmem:[#allocation1 + $0x8] sm:$0xff pattern:$0x75316420]
        %v501 = vld.sshfl [vmem:[#allocation1 + $0x10] sm:$0xff pattern:$0x75316420]
        %502 = vrot.lane.b32.xlu0 %v499, 90
        %v503 = vpop.permute.xlu0 %502
        %504 = vrot.lane.b32.xlu0 %v500, 90
        %v505 = vpop.permute.xlu0 %504
        %506 = vrot.lane.b32.xlu0 %v501, 90
        %v507 = vpop.permute.xlu0 %506
        %vm508 = vcmask 736256
        %v509 = vsel %vm508, %v503, %v505
        %v510 = vsel %vm508, %v505, %v507
        %vm512 = vcmask 244736
        %v513 = vsel %vm512, %v507, 0.0
        %514 = vst [vmem:[#allocation1] ss:$2 sm:$0xff] %v358
        %s515 = scalar_lea.vmem [#allocation1], 16
        %516 = vst [vmem:[%s515] ss:$2 sm:$0xff] %v359
        %v517 = vld.sshfl [vmem:[#allocation1] sm:$0xff pattern:$0x75316420]
        %v518 = vld.sshfl [vmem:[#allocation1 + $0x8] sm:$0xff pattern:$0x75316420]
        %v519 = vld.sshfl [vmem:[#allocation1 + $0x10] sm:$0xff pattern:$0x75316420]
        %v524 = vrot.slane %v377, 4
        %v525 = vrot.slane %v378, 4
        %v526 = vrot.slane %v381, 4
        %v531 = vrot.slane %v415, 4
        %v532 = vrot.slane %v416, 4
        %v533 = vrot.slane %v419, 4
        %v538 = vrot.slane %v453, 4
        %v539 = vrot.slane %v454, 4
        %v540 = vrot.slane %v457, 4
        %v545 = vrot.slane %v491, 4
        %v546 = vrot.slane %v492, 4
        %v547 = vrot.slane %v495, 4
        %vm551 = vcmask 1043456
        %v552 = vsel %vm551, %v517, %v524
        %v553 = vsel %vm551, %v518, %v525
        %v554 = vsel %vm551, %v519, %v526
        %v555 = vsel %vm551, %v395, %v531
        %v556 = vsel %vm551, %v396, %v532
        %v557 = vsel %vm551, %v401, %v533
        %v558 = vsel %vm551, %v433, %v538
        %v559 = vsel %vm551, %v434, %v539
        %v560 = vsel %vm551, %v439, %v540
        %v561 = vsel %vm551, %v471, %v545
        %v562 = vsel %vm551, %v472, %v546
        %v563 = vsel %vm551, %v477, %v547
        %v564 = vld [vmem:[%s2] sm:$0xff]
        %566 = vset.pattern.permute.xlu0 0
        %567 = vperm.xlu0 %566, %v564
        %v568 = vpop.permute.xlu0 %567
        %vm570 = vcmask 293888
        %v572 = vsel %vm570, %v361, 0
        %v574 = vsel %vm551, %v509, 0
        %v576 = vsel %vm551, %v510, 0
        %v579 = vsel %vm551, %v513, 0
        %581 = vmatpush.msra.mxu0 0.0
        %582 = vmatpush.msra.mxu0 0.0
        %583 = vmatpush.msra.mxu0 0.0
        %584 = vmatpush.msra.mxu0 0.0
        %585 = vmatpush.msra.mxu0 0.0
        %586 = vmatpush.msra.mxu0 0.0
        %587 = vmatpush.msra.mxu0 0.0
        %588 = vmatpush.msra.mxu0 0.0
        %589 = vmatpush.msra.mxu0 0.0
        %590 = vmatpush.msra.mxu0 0.0
        %591 = vmatpush.msra.mxu0 0.0
        %592 = vmatpush.msra.mxu0 %v574
        %593 = vmatpush.msra.mxu0 %v561
        %594 = vmatpush.msra.mxu0 %v558
        %595 = vmatpush.msra.mxu0 %v555
        %596 = vmatpush.msra.mxu0 %v552
        %597 = vmatmul.f32.gmra.mxu0 %v572
        %v598 = vpop.f32.mrf.mxu0
        %v599 = vadd.f32 %v568, %v598
        %600 = vdwg.mxu0
        %601 = vmatpush.msra.mxu0 0.0
        %602 = vmatpush.msra.mxu0 0.0
        %603 = vmatpush.msra.mxu0 0.0
        %604 = vmatpush.msra.mxu0 0.0
        %605 = vmatpush.msra.mxu0 0.0
        %606 = vmatpush.msra.mxu0 0.0
        %607 = vmatpush.msra.mxu0 0.0
        %608 = vmatpush.msra.mxu0 0.0
        %609 = vmatpush.msra.mxu0 0.0
        %610 = vmatpush.msra.mxu0 0.0
        %611 = vmatpush.msra.mxu0 0.0
        %612 = vmatpush.msra.mxu0 %v576
        %613 = vmatpush.msra.mxu0 %v562
        %614 = vmatpush.msra.mxu0 %v559
        %615 = vmatpush.msra.mxu0 %v556
        %616 = vmatpush.msra.mxu0 %v553
        %617 = vmatmul.f32.gmra.mxu0 %v572
        %v618 = vpop.f32.mrf.mxu0
        %v619 = vadd.f32 %v568, %v618
        %620 = vdwg.mxu0
        %621 = vmatpush.msra.mxu0 0.0
        %622 = vmatpush.msra.mxu0 0.0
        %623 = vmatpush.msra.mxu0 0.0
        %624 = vmatpush.msra.mxu0 0.0
        %625 = vmatpush.msra.mxu0 0.0
        %626 = vmatpush.msra.mxu0 0.0
        %627 = vmatpush.msra.mxu0 0.0
        %628 = vmatpush.msra.mxu0 0.0
        %629 = vmatpush.msra.mxu0 0.0
        %630 = vmatpush.msra.mxu0 0.0
        %631 = vmatpush.msra.mxu0 0.0
        %632 = vmatpush.msra.mxu0 %v579
        %633 = vmatpush.msra.mxu0 %v563
        %634 = vmatpush.msra.mxu0 %v560
        %635 = vmatpush.msra.mxu0 %v557
        %636 = vmatpush.msra.mxu0 %v554
        %637 = vmatmul.f32.gmra.mxu0 %v572
        %v638 = vpop.f32.mrf.mxu0
        %v639 = vadd.f32 %v568, %v638
        %640 = vdwg.mxu0
        %v641 = vxor.u32 %v599, 2147483648
        %v642 = vxor.u32 %v619, 2147483648
        %v643 = vxor.u32 %v639, 2147483648
        %v644 = vmul.f32 %v641, 1.442695
        %v645 = vpow.pop %v644
        %v646 = vmul.f32 %v642, 1.442695
        %v647 = vpow.pop %v646
        %v648 = vmul.f32 %v643, 1.442695
        %v649 = vpow.pop %v648
        %v650 = vadd.f32 %v645, 1.0
        %v651 = vadd.f32 %v647, 1.0
        %v652 = vadd.f32 %v649, 1.0
        %v653 = vrcp.pop %v650
        %v654 = vmul.f32 %v650, %v653
        %v655 = vsub.f32 1.0, %v654
        %v656 = vmul.f32 %v653, %v655
        %v657 = vadd.f32 %v653, %v656
        %vm658 = vweird.f32 %v650
        %vm659 = vweird.f32 %v653
        %vm660 = vmor %vm658, %vm659
        %v661 = vsel %vm660, %v653, %v657
        %v662 = vand.u32 2147483647, %v650
        %vm663 = vcmp.eq.f32.partialorder %v662, 8.507059e+37
        %v664 = vand.u32 %v650, 2147483648
        %v665 = vor.u32 1.1754944e-38, %v664
        %v666 = vsel %vm663, %v665, %v661
        %v667 = vmul.f32 1.0, %v666
        %v668 = vrcp.pop %v651
        %v669 = vmul.f32 %v651, %v668
        %v670 = vsub.f32 1.0, %v669
        %v671 = vmul.f32 %v668, %v670
        %v672 = vadd.f32 %v668, %v671
        %vm673 = vweird.f32 %v651
        %vm674 = vweird.f32 %v668
        %vm675 = vmor %vm673, %vm674
        %v676 = vsel %vm675, %v668, %v672
        %v677 = vand.u32 2147483647, %v651
        %vm678 = vcmp.eq.f32.partialorder %v677, 8.507059e+37
        %v679 = vand.u32 %v651, 2147483648
        %v680 = vor.u32 1.1754944e-38, %v679
        %v681 = vsel %vm678, %v680, %v676
        %v682 = vmul.f32 1.0, %v681
        %v683 = vrcp.pop %v652
        %v684 = vmul.f32 %v652, %v683
        %v685 = vsub.f32 1.0, %v684
        %v686 = vmul.f32 %v683, %v685
        %v687 = vadd.f32 %v683, %v686
        %vm688 = vweird.f32 %v652
        %vm689 = vweird.f32 %v683
        %vm690 = vmor %vm688, %vm689
        %v691 = vsel %vm690, %v683, %v687
        %v692 = vand.u32 2147483647, %v652
        %vm693 = vcmp.eq.f32.partialorder %v692, 8.507059e+37
        %v694 = vand.u32 %v652, 2147483648
        %v695 = vor.u32 1.1754944e-38, %v694
        %v696 = vsel %vm693, %v695, %v691
        %v697 = vmul.f32 1.0, %v696
        %v698 = vmul.f32 %v599, %v667
        %v699 = vmul.f32 %v619, %v682
        %v700 = vmul.f32 %v639, %v697
        %704 = vrot.lane.b32.xlu0 %v698, 19
        %v705 = vpop.permute.xlu0 %704
        %706 = vrot.lane.b32.xlu0 %v699, 19
        %v707 = vpop.permute.xlu0 %706
        %708 = vrot.lane.b32.xlu0 %v700, 19
        %v709 = vpop.permute.xlu0 %708
        %vm710 = vcmask 154624
        %v711 = vsel %vm710, %v705, %v707
        %v712 = vsel %vm710, %v707, %v709
        %v716 = vsel %vm710, 0.0, %v705
        %v718 = vperm.slane %v360, 0
        %v719 = vperm.slane %v360, 1
        %v720 = vperm.slane %v360, 2
        %v724 = vmul.f32 %v716, %v718
        %v725 = vmul.f32 %v711, %v719
        %v726 = vmul.f32 %v712, %v720
        %v727 = vld [vmem:[%s3] sm:$0xff]
        %731 = vrot.lane.b32.xlu0 %v724, 127
        %v732 = vpop.permute.xlu0 %731
        %733 = vrot.lane.b32.xlu0 %v725, 127
        %v734 = vpop.permute.xlu0 %733
        %735 = vrot.lane.b32.xlu0 %v726, 127
        %v736 = vpop.permute.xlu0 %735
        %v737 = vsel %vm376, %v732, %v734
        %v738 = vsel %vm376, %v734, %v736
        %v742 = vsel %vm380, %v736, 0.0
        %743 = vrot.lane.b32.xlu0 %v724, 126
        %v744 = vpop.permute.xlu0 %743
        %745 = vrot.lane.b32.xlu0 %v725, 126
        %v746 = vpop.permute.xlu0 %745
        %747 = vrot.lane.b32.xlu0 %v726, 126
        %v748 = vpop.permute.xlu0 %747
        %v749 = vsel %vm394, %v744, %v746
        %v750 = vsel %vm394, %v746, %v748
        %v754 = vsel %vm400, %v748, 0.0
        %755 = vrot.lane.b32.xlu0 %v724, 110
        %v756 = vpop.permute.xlu0 %755
        %757 = vrot.lane.b32.xlu0 %v725, 110
        %v758 = vpop.permute.xlu0 %757
        %759 = vrot.lane.b32.xlu0 %v726, 110
        %v760 = vpop.permute.xlu0 %759
        %v761 = vsel %vm414, %v756, %v758
        %v762 = vsel %vm414, %v758, %v760
        %v766 = vsel %vm418, %v760, 0.0
        %767 = vrot.lane.b32.xlu0 %v724, 109
        %v768 = vpop.permute.xlu0 %767
        %769 = vrot.lane.b32.xlu0 %v725, 109
        %v770 = vpop.permute.xlu0 %769
        %771 = vrot.lane.b32.xlu0 %v726, 109
        %v772 = vpop.permute.xlu0 %771
        %v773 = vsel %vm432, %v768, %v770
        %v774 = vsel %vm432, %v770, %v772
        %v778 = vsel %vm438, %v772, 0.0
        %779 = vrot.lane.b32.xlu0 %v724, 108
        %v780 = vpop.permute.xlu0 %779
        %781 = vrot.lane.b32.xlu0 %v725, 108
        %v782 = vpop.permute.xlu0 %781
        %783 = vrot.lane.b32.xlu0 %v726, 108
        %v784 = vpop.permute.xlu0 %783
        %v785 = vsel %vm452, %v780, %v782
        %v786 = vsel %vm452, %v782, %v784
        %v790 = vsel %vm456, %v784, 0.0
        %791 = vrot.lane.b32.xlu0 %v724, 92
        %v792 = vpop.permute.xlu0 %791
        %793 = vrot.lane.b32.xlu0 %v725, 92
        %v794 = vpop.permute.xlu0 %793
        %795 = vrot.lane.b32.xlu0 %v726, 92
        %v796 = vpop.permute.xlu0 %795
        %v797 = vsel %vm470, %v792, %v794
        %v798 = vsel %vm470, %v794, %v796
        %v802 = vsel %vm476, %v796, 0.0
        %803 = vrot.lane.b32.xlu0 %v724, 91
        %v804 = vpop.permute.xlu0 %803
        %805 = vrot.lane.b32.xlu0 %v725, 91
        %v806 = vpop.permute.xlu0 %805
        %807 = vrot.lane.b32.xlu0 %v726, 91
        %v808 = vpop.permute.xlu0 %807
        %v809 = vsel %vm490, %v804, %v806
        %v810 = vsel %vm490, %v806, %v808
        %v814 = vsel %vm494, %v808, 0.0
        %815 = vrot.lane.b32.xlu0 %v724, 90
        %v816 = vpop.permute.xlu0 %815
        %817 = vrot.lane.b32.xlu0 %v725, 90
        %v818 = vpop.permute.xlu0 %817
        %819 = vrot.lane.b32.xlu0 %v726, 90
        %v820 = vpop.permute.xlu0 %819
        %v821 = vsel %vm508, %v816, %v818
        %v822 = vsel %vm508, %v818, %v820
        %v826 = vsel %vm512, %v820, 0.0
        %v827 = vld [vmem:[%s4] sm:$0xff]
        %829 = vset.pattern.permute.xlu0 0
        %830 = vperm.xlu0 %829, %v827
        %v831 = vpop.permute.xlu0 %830
        %vm833 = vcmask 588800
        %v835 = vsel %vm833, %v727, 0
        %837 = vmatpush.msra.mxu0 0.0
        %838 = vmatpush.msra.mxu0 0.0
        %839 = vmatpush.msra.mxu0 0.0
        %840 = vmatpush.msra.mxu0 0.0
        %841 = vmatpush.msra.mxu0 0.0
        %842 = vmatpush.msra.mxu0 0.0
        %843 = vmatpush.msra.mxu0 0.0
        %844 = vmatpush.msra.mxu0 %v821
        %845 = vmatpush.msra.mxu0 %v809
        %846 = vmatpush.msra.mxu0 %v797
        %847 = vmatpush.msra.mxu0 %v785
        %848 = vmatpush.msra.mxu0 %v773
        %849 = vmatpush.msra.mxu0 %v761
        %850 = vmatpush.msra.mxu0 %v749
        %851 = vmatpush.msra.mxu0 %v737
        %852 = vmatpush.msra.mxu0 %v724
        %853 = vmatmul.f32.gmra.mxu0 %v835
        %v854 = vpop.f32.mrf.mxu0
        %v855 = vadd.f32 %v831, %v854
        %856 = vdwg.mxu0
        %857 = vmatpush.msra.mxu0 0.0
        %858 = vmatpush.msra.mxu0 0.0
        %859 = vmatpush.msra.mxu0 0.0
        %860 = vmatpush.msra.mxu0 0.0
        %861 = vmatpush.msra.mxu0 0.0
        %862 = vmatpush.msra.mxu0 0.0
        %863 = vmatpush.msra.mxu0 0.0
        %864 = vmatpush.msra.mxu0 %v822
        %865 = vmatpush.msra.mxu0 %v810
        %866 = vmatpush.msra.mxu0 %v798
        %867 = vmatpush.msra.mxu0 %v786
        %868 = vmatpush.msra.mxu0 %v774
        %869 = vmatpush.msra.mxu0 %v762
        %870 = vmatpush.msra.mxu0 %v750
        %871 = vmatpush.msra.mxu0 %v738
        %872 = vmatpush.msra.mxu0 %v725
        %873 = vmatmul.f32.gmra.mxu0 %v835
        %v874 = vpop.f32.mrf.mxu0
        %v875 = vadd.f32 %v831, %v874
        %876 = vdwg.mxu0
        %877 = vmatpush.msra.mxu0 0.0
        %878 = vmatpush.msra.mxu0 0.0
        %879 = vmatpush.msra.mxu0 0.0
        %880 = vmatpush.msra.mxu0 0.0
        %881 = vmatpush.msra.mxu0 0.0
        %882 = vmatpush.msra.mxu0 0.0
        %883 = vmatpush.msra.mxu0 0.0
        %884 = vmatpush.msra.mxu0 %v826
        %885 = vmatpush.msra.mxu0 %v814
        %886 = vmatpush.msra.mxu0 %v802
        %887 = vmatpush.msra.mxu0 %v790
        %888 = vmatpush.msra.mxu0 %v778
        %889 = vmatpush.msra.mxu0 %v766
        %890 = vmatpush.msra.mxu0 %v754
        %891 = vmatpush.msra.mxu0 %v742
        %892 = vmatpush.msra.mxu0 %v726
        %893 = vmatmul.f32.gmra.mxu0 %v835
        %v894 = vpop.f32.mrf.mxu0
        %v895 = vadd.f32 %v831, %v894
        %896 = vdwg.mxu0
        %v897 = vld [vmem:[%s8] sm:$0xff]
        %v898 = vld [vmem:[%s8 + $0x8] sm:$0xff]
        %v899 = vld [vmem:[%s8 + $0x10] sm:$0xff]
        %v900 = vld [vmem:[%s8 + $0x18] sm:$0xff]
        %v901 = vld [vmem:[%s8 + $0x20] sm:$0xff]
        %v902 = vld [vmem:[%s8 + $0x28] sm:$0xff]
        %v903 = vld [vmem:[%s8 + $0x30] sm:$0xff]
        %v904 = vld [vmem:[%s8 + $0x38] sm:$0xff]
        %v905 = vld [vmem:[%s8 + $0x40] sm:$0xff]
        %v906 = vld [vmem:[%s8 + $0x48] sm:$0xff]
        %v907 = vld [vmem:[%s8 + $0x50] sm:$0xff]
        %v908 = vld [vmem:[%s8 + $0x58] sm:$0xff]
        %v909 = vld [vmem:[%s8 + $0x60] sm:$0xff]
        %v910 = vld [vmem:[%s8 + $0x68] sm:$0xff]
        %v911 = vld [vmem:[%s8 + $0x70] sm:$0xff]
        %v912 = vld [vmem:[%s8 + $0x78] sm:$0xff]
        %v913 = vld [vmem:[%s8 + $0x80] sm:$0xff]
        %v914 = vld [vmem:[%s8 + $0x88] sm:$0xff]
        %v915 = vld [vmem:[%s8 + $0x90] sm:$0xff]
        %v916 = vld [vmem:[%s8 + $0x98] sm:$0xff]
        %v917 = vld [vmem:[%s8 + $0xa0] sm:$0xff]
        %v918 = vld [vmem:[%s8 + $0xa8] sm:$0xff]
        %v919 = vld [vmem:[%s8 + $0xb0] sm:$0xff]
        %v920 = vld [vmem:[%s8 + $0xb8] sm:$0xff]
        %v921 = vld [vmem:[%s8 + $0xc0] sm:$0xff]
        %v922 = vld [vmem:[%s8 + $0xc8] sm:$0xff]
        %v923 = vld [vmem:[%s8 + $0xd0] sm:$0xff]
        %v924 = vld [vmem:[%s8 + $0xd8] sm:$0xff]
        %v925 = vld [vmem:[%s8 + $0xe0] sm:$0xff]
        %v926 = vld [vmem:[%s8 + $0xe8] sm:$0xff]
        %v927 = vld [vmem:[%s8 + $0xf0] sm:$0xff]
        %v928 = vld [vmem:[%s8 + $0xf8] sm:$0xff]
        %v929 = vld [vmem:[%s8 + $0x100] sm:$0xff]
        %v930 = vld [vmem:[%s8 + $0x108] sm:$0xff]
        %v931 = vld [vmem:[%s8 + $0x110] sm:$0xff]
        %v932 = vld [vmem:[%s8 + $0x118] sm:$0xff]
        %v933 = vld [vmem:[%s8 + $0x120] sm:$0xff]
        %v934 = vld [vmem:[%s8 + $0x128] sm:$0xff]
        %v935 = vld [vmem:[%s8 + $0x130] sm:$0xff]
        %v936 = vld [vmem:[%s8 + $0x138] sm:$0xff]
        %v937 = vld [vmem:[%s8 + $0x140] sm:$0xf]
        %v938 = vld [vmem:[%s9] sm:$0xff]
        %v939 = vld [vmem:[%s9 + $0x8] sm:$0xff]
        %v940 = vld [vmem:[%s9 + $0x10] sm:$0xff]
        %v941 = vld [vmem:[%s9 + $0x18] sm:$0xff]
        %v942 = vld [vmem:[%s9 + $0x20] sm:$0xff]
        %v943 = vld [vmem:[%s9 + $0x28] sm:$0xff]
        %v944 = vld [vmem:[%s9 + $0x30] sm:$0xff]
        %v945 = vld [vmem:[%s9 + $0x38] sm:$0xff]
        %v946 = vld [vmem:[%s9 + $0x40] sm:$0xff]
        %v947 = vld [vmem:[%s9 + $0x48] sm:$0xff]
        %v948 = vld [vmem:[%s9 + $0x50] sm:$0xff]
        %v949 = vld [vmem:[%s9 + $0x58] sm:$0xff]
        %v950 = vld [vmem:[%s9 + $0x60] sm:$0xff]
        %v951 = vld [vmem:[%s9 + $0x68] sm:$0xff]
        %v952 = vld [vmem:[%s9 + $0x70] sm:$0xff]
        %v953 = vld [vmem:[%s9 + $0x78] sm:$0xff]
        %v954 = vld [vmem:[%s9 + $0x80] sm:$0xff]
        %v955 = vld [vmem:[%s9 + $0x88] sm:$0xff]
        %v956 = vld [vmem:[%s9 + $0x90] sm:$0xff]
        %v957 = vld [vmem:[%s9 + $0x98] sm:$0xff]
        %v958 = vld [vmem:[%s9 + $0xa0] sm:$0xff]
        %v959 = vld [vmem:[%s9 + $0xa8] sm:$0xff]
        %v960 = vld [vmem:[%s9 + $0xb0] sm:$0xff]
        %v961 = vld [vmem:[%s9 + $0xb8] sm:$0xff]
        %v962 = vld [vmem:[%s9 + $0xc0] sm:$0xff]
        %v963 = vld [vmem:[%s9 + $0xc8] sm:$0xff]
        %v964 = vld [vmem:[%s9 + $0xd0] sm:$0xff]
        %v965 = vld [vmem:[%s9 + $0xd8] sm:$0xff]
        %v966 = vld [vmem:[%s9 + $0xe0] sm:$0xff]
        %v967 = vld [vmem:[%s9 + $0xe8] sm:$0xff]
        %v968 = vld [vmem:[%s9 + $0xf0] sm:$0xff]
        %v969 = vld [vmem:[%s9 + $0xf8] sm:$0xff]
        %v970 = vld [vmem:[%s9 + $0x100] sm:$0xff]
        %v971 = vld [vmem:[%s9 + $0x108] sm:$0xff]
        %v972 = vld [vmem:[%s9 + $0x110] sm:$0xff]
        %v973 = vld [vmem:[%s9 + $0x118] sm:$0xff]
        %v974 = vld [vmem:[%s9 + $0x120] sm:$0xff]
        %v975 = vld [vmem:[%s9 + $0x128] sm:$0xff]
        %v976 = vld [vmem:[%s9 + $0x130] sm:$0xff]
        %v977 = vld [vmem:[%s9 + $0x138] sm:$0xff]
        %v978 = vld [vmem:[%s9 + $0x140] sm:$0xf]
        %979 = vst [vmem:[#allocation1] ss:$2 sm:$0xff] %v358
        %s980 = scalar_lea.vmem [#allocation1], 16
        %981 = vst [vmem:[%s980] ss:$2 sm:$0xff] %v359
        %v982 = vld.sshfl [vmem:[#allocation1] sm:$0xff pattern:$0x75316420]
        %v983 = vld.sshfl [vmem:[#allocation1 + $0x8] sm:$0xff pattern:$0x75316420]
        %v984 = vld.sshfl [vmem:[#allocation1 + $0x10] sm:$0xff pattern:$0x75316420]
        %vm987 = vcmask 556032
        %v988 = vsel %vm987, %v984, 0
        %v991 = vsel %vm551, %v978, 0
        %993 = vmatpush.msra.mxu0 %v953
        %994 = vmatpush.msra.mxu0 %v952
        %995 = vmatpush.msra.mxu0 %v951
        %996 = vmatpush.msra.mxu0 %v950
        %997 = vmatpush.msra.mxu0 %v949
        %998 = vmatpush.msra.mxu0 %v948
        %999 = vmatpush.msra.mxu0 %v947
        %1000 = vmatpush.msra.mxu0 %v946
        %1001 = vmatpush.msra.mxu0 %v945
        %1002 = vmatpush.msra.mxu0 %v944
        %1003 = vmatpush.msra.mxu0 %v943
        %1004 = vmatpush.msra.mxu0 %v942
        %1005 = vmatpush.msra.mxu0 %v941
        %1006 = vmatpush.msra.mxu0 %v940
        %1007 = vmatpush.msra.mxu0 %v939
        %1008 = vmatpush.msra.mxu0 %v938
        %1009 = vmatmul.f32.gmra.mxu0 %v982
        %v1010 = vpop.f32.mrf.mxu0
        %v1011 = vadd.f32 0.0, %v1010
        %1012 = vdwg.mxu0
        %1013 = vmatpush.msra.mxu0 %v969
        %1014 = vmatpush.msra.mxu0 %v968
        %1015 = vmatpush.msra.mxu0 %v967
        %1016 = vmatpush.msra.mxu0 %v966
        %1017 = vmatpush.msra.mxu0 %v965
        %1018 = vmatpush.msra.mxu0 %v964
        %1019 = vmatpush.msra.mxu0 %v963
        %1020 = vmatpush.msra.mxu0 %v962
        %1021 = vmatpush.msra.mxu0 %v961
        %1022 = vmatpush.msra.mxu0 %v960
        %1023 = vmatpush.msra.mxu0 %v959
        %1024 = vmatpush.msra.mxu0 %v958
        %1025 = vmatpush.msra.mxu0 %v957
        %1026 = vmatpush.msra.mxu0 %v956
        %1027 = vmatpush.msra.mxu0 %v955
        %1028 = vmatpush.msra.mxu0 %v954
        %1029 = vmatmul.f32.gmra.mxu0 %v983
        %v1030 = vpop.f32.mrf.mxu0
        %v1031 = vadd.f32 %v1011, %v1030
        %1032 = vdwg.mxu0
        %1033 = vmatpush.msra.mxu0 0.0
        %1034 = vmatpush.msra.mxu0 0.0
        %1035 = vmatpush.msra.mxu0 0.0
        %1036 = vmatpush.msra.mxu0 0.0
        %1037 = vmatpush.msra.mxu0 0.0
        %1038 = vmatpush.msra.mxu0 0.0
        %1039 = vmatpush.msra.mxu0 0.0
        %1040 = vmatpush.msra.mxu0 %v991
        %1041 = vmatpush.msra.mxu0 %v977
        %1042 = vmatpush.msra.mxu0 %v976
        %1043 = vmatpush.msra.mxu0 %v975
        %1044 = vmatpush.msra.mxu0 %v974
        %1045 = vmatpush.msra.mxu0 %v973
        %1046 = vmatpush.msra.mxu0 %v972
        %1047 = vmatpush.msra.mxu0 %v971
        %1048 = vmatpush.msra.mxu0 %v970
        %1049 = vmatmul.f32.gmra.mxu0 %v988
        %v1050 = vpop.f32.mrf.mxu0
        %v1051 = vadd.f32 %v1031, %v1050
        %1052 = vdwg.mxu0
        %v1053 = vld [vmem:[%s5] sm:$0xff]
        %v1054 = vld [vmem:[%s6] sm:$0xff]
        %1056 = vset.pattern.permute.xlu0 0
        %1057 = vperm.xlu0 %1056, %v1054
        %v1058 = vpop.permute.xlu0 %1057
        %vm1060 = vcmask 31744
        %v1062 = vsel %vm1060, %v1053, 0
        %v1065 = vsel %vm551, %v1051, 0
        %1067 = vmatpush.msra.mxu0 0.0
        %1068 = vmatpush.msra.mxu0 0.0
        %1069 = vmatpush.msra.mxu0 0.0
        %1070 = vmatpush.msra.mxu0 0.0
        %1071 = vmatpush.msra.mxu0 0.0
        %1072 = vmatpush.msra.mxu0 0.0
        %1073 = vmatpush.msra.mxu0 0.0
        %1074 = vmatpush.msra.mxu0 0.0
        %1075 = vmatpush.msra.mxu0 0.0
        %1076 = vmatpush.msra.mxu0 0.0
        %1077 = vmatpush.msra.mxu0 0.0
        %1078 = vmatpush.msra.mxu0 0.0
        %1079 = vmatpush.msra.mxu0 0.0
        %1080 = vmatpush.msra.mxu0 0.0
        %1081 = vmatpush.msra.mxu0 0.0
        %1082 = vmatpush.msra.mxu0 %v1065
        %1083 = vmatmul.f32.gmra.mxu0 %v1062
        %v1084 = vpop.f32.mrf.mxu0
        %v1085 = vadd.f32 %v1058, %v1084
        %1086 = vdwg.mxu0
        %v1088 = vsel %vm987, %v895, 0
        %v1091 = vsel %vm551, %v937, 0
        %1093 = vmatpush.msra.mxu0 %v912
        %1094 = vmatpush.msra.mxu0 %v911
        %1095 = vmatpush.msra.mxu0 %v910
        %1096 = vmatpush.msra.mxu0 %v909
        %1097 = vmatpush.msra.mxu0 %v908
        %1098 = vmatpush.msra.mxu0 %v907
        %1099 = vmatpush.msra.mxu0 %v906
        %1100 = vmatpush.msra.mxu0 %v905
        %1101 = vmatpush.msra.mxu0 %v904
        %1102 = vmatpush.msra.mxu0 %v903
        %1103 = vmatpush.msra.mxu0 %v902
        %1104 = vmatpush.msra.mxu0 %v901
        %1105 = vmatpush.msra.mxu0 %v900
        %1106 = vmatpush.msra.mxu0 %v899
        %1107 = vmatpush.msra.mxu0 %v898
        %1108 = vmatpush.msra.mxu0 %v897
        %1109 = vmatmul.f32.gmra.mxu0 %v855
        %v1110 = vpop.f32.mrf.mxu0
        %v1111 = vadd.f32 %v1085, %v1110
        %1112 = vdwg.mxu0
        %1113 = vmatpush.msra.mxu0 %v928
        %1114 = vmatpush.msra.mxu0 %v927
        %1115 = vmatpush.msra.mxu0 %v926
        %1116 = vmatpush.msra.mxu0 %v925
        %1117 = vmatpush.msra.mxu0 %v924
        %1118 = vmatpush.msra.mxu0 %v923
        %1119 = vmatpush.msra.mxu0 %v922
        %1120 = vmatpush.msra.mxu0 %v921
        %1121 = vmatpush.msra.mxu0 %v920
        %1122 = vmatpush.msra.mxu0 %v919
        %1123 = vmatpush.msra.mxu0 %v918
        %1124 = vmatpush.msra.mxu0 %v917
        %1125 = vmatpush.msra.mxu0 %v916
        %1126 = vmatpush.msra.mxu0 %v915
        %1127 = vmatpush.msra.mxu0 %v914
        %1128 = vmatpush.msra.mxu0 %v913
        %1129 = vmatmul.f32.gmra.mxu0 %v875
        %v1130 = vpop.f32.mrf.mxu0
        %v1131 = vadd.f32 %v1111, %v1130
        %1132 = vdwg.mxu0
        %1133 = vmatpush.msra.mxu0 0.0
        %1134 = vmatpush.msra.mxu0 0.0
        %1135 = vmatpush.msra.mxu0 0.0
        %1136 = vmatpush.msra.mxu0 0.0
        %1137 = vmatpush.msra.mxu0 0.0
        %1138 = vmatpush.msra.mxu0 0.0
        %1139 = vmatpush.msra.mxu0 0.0
        %1140 = vmatpush.msra.mxu0 %v1091
        %1141 = vmatpush.msra.mxu0 %v936
        %1142 = vmatpush.msra.mxu0 %v935
        %1143 = vmatpush.msra.mxu0 %v934
        %1144 = vmatpush.msra.mxu0 %v933
        %1145 = vmatpush.msra.mxu0 %v932
        %1146 = vmatpush.msra.mxu0 %v931
        %1147 = vmatpush.msra.mxu0 %v930
        %1148 = vmatpush.msra.mxu0 %v929
        %1149 = vmatmul.f32.gmra.mxu0 %v1088
        %v1150 = vpop.f32.mrf.mxu0
        %v1151 = vadd.f32 %v1131, %v1150
        %1152 = vdwg.mxu0
        %vm1153 = vcmask 523264
        %1154 = vst.msk [vmem:[%s352] sm:$0xff] %vm1153, %v1151
        %s1155 = sand.u32 %s247, 1
        %s1156 = scalar_lea.sflag [#allocation3], %s1155
        %s1157 = sand.u32 %s247, 1
        %s1158 = smul.addr %s1157, 8
        %s1159 = scalar_lea.vmem [#allocation2], %s1158
        // Predicated region
        $region61: #{tpu_custom_call.1} parent=59 // pred_check
          %p1160 = pneg %p257
        $region62: #{tpu_custom_call.1} parent=59 // pred_check_branch
          %1162 = sbr.rel (%p1160) target = $region64
        $region63: #{tpu_custom_call.1} parent=59 // pred_region
          %1164 = vsyncadd %s1156, 0
          %s1165 = smul.addr %s24, 8
          %s1166 = scalar_lea.hbm %s10, %s1165
          %s1168 = sshll.u32 %s1159, 4
          %s1169 = int_to_ptr.vmem [resolvable:$true] %s1168
          %s1170 = sshll.u32 %s1166, 4
          %s1171 = int_to_ptr.hbm [resolvable:$true] %s1170
          %1173 = dma.vmem_to_hbm [thread:$0]  %s1169, 128, %s1171, %s1156
        $region64: #{tpu_custom_call.1} parent=59 // pred_fallthru
          _
      $region60: #{tpu_custom_call.1} parent=5 // pred_fallthru
        _
      %p1174 = scmp.le.s32.totalorder 2, %s19
      // Predicated region
      $region65: #{tpu_custom_call.1} parent=5 // pred_check
        %p1175 = pneg %p1174
      $region66: #{tpu_custom_call.1} parent=5 // pred_check_branch
        %1177 = sbr.rel (%p1175) target = $region68
      $region67: #{tpu_custom_call.1} parent=5 // pred_region
        %s1178 = ssub.s32 %s19, 2
        // Predicated region
        $region69: #{tpu_custom_call.1} parent=67 // pred_check
          %p1179 = pneg %p263
        $region70: #{tpu_custom_call.1} parent=67 // pred_check_branch
          %1181 = sbr.rel (%p1179) target = $region72
        $region71: #{tpu_custom_call.1} parent=67 // pred_region
          %s1182 = sand.u32 %s248, 1
          %s1183 = scalar_lea.sflag [#allocation3], %s1182
          %s1184 = sand.u32 %s248, 1
          %s1185 = smul.addr %s1184, 8
          %s1186 = scalar_lea.vmem [#allocation2], %s1185
          %1188 = dma.done %s1183, 128
        $region72: #{tpu_custom_call.1} parent=67 // pred_fallthru
          _
      $region68: #{tpu_custom_call.1} parent=5 // pred_fallthru
        _
    $region6: #{tpu_custom_call.1} parent=1 // loop_footer
      %s23 = sadd.s32 1, %s19
    $region7: #{tpu_custom_call.1} parent=1 // loop_footer_branch
      %18 = sbr.rel target = $region3
    $region8: #{tpu_custom_call.1} parent=1 // loop_exit
      _
    %1189 = vsyncpa [#allocation3], 1
    %s1190 = scalar_lea.sflag [#allocation3], 1
    %1191 = vsyncpa %s1190, 1

</llo_original>
